<compile_context>
chip_gen: v5e
topology: v5e:2x2
jax: 0.10.0
libtpu: 0.0.40
codegen_flags: <defaults>
</compile_context>

<pallas_src>
import jax
import jax.numpy as jnp
from jax.experimental import pallas as pl
from jax.experimental.pallas import tpu as pltpu

# ---- module hyper-parameters (match DeepRationalSR.__init__ defaults) -------
P_DEGREE = 3
Q_DEGREE = 2
NUM_HIDDEN_LAYERS = 3
HIDDEN_SIZE = 101
P_COEFF_COUNT = P_DEGREE + 1
Q_COEFF_COUNT = Q_DEGREE
OUT_COEFFS = P_COEFF_COUNT + Q_COEFF_COUNT
LEAKY_SLOPE = 0.01  # nn.LeakyReLU default


def _leaky_relu(x):
    return jnp.where(x >= 0, x, LEAKY_SLOPE * x)


# -----------------------------------------------------------------------------
# Coefficient MLP (3x Linear(101,101)+LeakyReLU, Linear(101,6)) -- plain jnp.
# Per review: trivially small, not worth a dedicated pallas_call.
# -----------------------------------------------------------------------------
def compute_coeffs(dummy, params):
    h = dummy                                     # (1, HIDDEN_SIZE)
    for li in range(NUM_HIDDEN_LAYERS):
        w, b = params[2 * li], params[2 * li + 1]
        h = _leaky_relu(h @ w + b)
    return h @ params[-2] + params[-1]            # (1, OUT_COEFFS)


# -----------------------------------------------------------------------------
# Pallas kernel: elementwise rational evaluation (the hot, memory-bound path).
# Horner form:
#   num = ((c0*x + c1)*x + c2)*x + c3
#   den = (c4*x + c5)*x + 1
#   out = num * recip(den)      (EUP approx reciprocal + 1 Newton-Raphson step)
# -----------------------------------------------------------------------------
def rational_kernel(coeffs_ref, x_ref, o_ref):
    x = x_ref[...]
    c = lambda i: coeffs_ref[0, i]               # scalar reads from SMEM

    num = c(0)
    for i in range(1, P_COEFF_COUNT):
        num = num * x + c(i)

    if Q_COEFF_COUNT == 0:
        den = jnp.ones_like(x)
    else:
        den = c(P_COEFF_COUNT)
        for i in range(1, Q_COEFF_COUNT):
            den = den * x + c(P_COEFF_COUNT + i)
        den = den * x + 1.0

    # EUP approx reciprocal (free bundle slot) refined by one Newton-Raphson
    # step (2 FMAs) -> ~f32-divide accuracy without the long VALU sequence.
    r = pl.reciprocal(den, approx=True)
    r = r * (2.0 - den * r)
    o_ref[...] = num * r


def _choose_block(M, N, itemsize=4, max_tile_bytes=4 << 20):
    """Pick a lane-dense tile of up to ~4 MiB and a megacore-friendly grid.

    * Prefer a full-row block (one contiguous HBM DMA per tile) if (8, N) fits
      the budget; otherwise split N into multiples of 128.
    * Rows: biggest multiple of 8 that fits the budget.
    * Ensure at least 2 blocks and roughly balanced row blocks so v7x's two
      TensorCores both get work.
    """
    if N % 128 == 0:
        if 8 * N * itemsize <= max_tile_bytes:
            bn = N                                        # full row, contiguous DMA
        else:
            bn = max(128, (max_tile_bytes // (8 * itemsize)) // 128 * 128)
    else:
        bn = N                                            # ragged fallback (wrapper pads)

    bm = min(M, max(8, (max_tile_bytes // (bn * itemsize)) // 8 * 8))

    gi, gj = pl.cdiv(M, bm), pl.cdiv(N, bn)
    if gi * gj < 2 and M > 8:                             # never strand a v7x core
        bm = (((M + 1) // 2) + 7) // 8 * 8
        gi = pl.cdiv(M, bm)
    if gi > 1:                                            # balance row blocks
        bal = (pl.cdiv(M, gi) + 7) // 8 * 8
        if 8 <= bal <= bm:
            bm = bal
    return bm, bn


def run_rational(coeffs, x2d):
    M, N = x2d.shape
    bm, bn = _choose_block(M, N)
    grid = (pl.cdiv(M, bm), pl.cdiv(N, bn))
    return pl.pallas_call(
        rational_kernel,
        out_shape=jax.ShapeDtypeStruct((M, N), jnp.float32),
        grid=grid,
        in_specs=[
            pl.BlockSpec(memory_space=pltpu.MemorySpace.SMEM),   # coeffs (1, 6)
            pl.BlockSpec((bm, bn), lambda i, j: (i, j)),          # x tile
        ],
        out_specs=pl.BlockSpec((bm, bn), lambda i, j: (i, j)),
        compiler_params=pltpu.CompilerParams(
            dimension_semantics=("parallel", "parallel"),
            # 4 buffers x ~4 MiB = ~16 MiB; 32 MiB is >= every default scoped
            # limit and < physical VMEM on v5e/v6e/v7x.
            vmem_limit_bytes=32 * 1024 * 1024,
        ),
    )(coeffs, x2d)


# -----------------------------------------------------------------------------
# Wrapper: present the kernel with a lane-dense 2D slab.
# -----------------------------------------------------------------------------
def _as_slab(x):
    """Return (slab, orig_size). slab has last dim % 128 == 0.

    orig_size is None when x was already lane-dense (no padding/copy needed),
    otherwise the original element count for un-padding.
    """
    if x.ndim >= 2 and x.shape[-1] % 128 == 0:
        return x.reshape(-1, x.shape[-1]), None
    flat = x.reshape(-1)
    total = flat.shape[0]
    n = 1024 if total >= 8 * 1024 else 128
    rows = ((total + n - 1) // n + 7) // 8 * 8
    pad = rows * n - total
    slab = jnp.pad(flat, (0, pad)).reshape(rows, n)
    return slab, total


def deep_rational_sr_forward(x, dummy, params):
    coeffs = compute_coeffs(dummy, params)        # (1, OUT_COEFFS) == .squeeze()'d coeffs
    slab, orig_size = _as_slab(x)
    out_slab = run_rational(coeffs, slab)
    if orig_size is None:
        out = out_slab.reshape(x.shape)
    else:
        out = out_slab.reshape(-1)[:orig_size].reshape(x.shape)
    return out, coeffs


# -----------------------------------------------------------------------------
# Parameter construction (deterministic, PyTorch-Linear-like uniform init).
# Weights stored as (in_features, out_features) -> wrapper computes h @ W + b.
# -----------------------------------------------------------------------------
def init_params(key):
    dims = [(HIDDEN_SIZE, HIDDEN_SIZE)] * NUM_HIDDEN_LAYERS + \
           [(HIDDEN_SIZE, OUT_COEFFS)]
    params = []
    for (fan_in, fan_out) in dims:
        key, kw, kb = jax.random.split(key, 3)
        bound = 1.0 / jnp.sqrt(fan_in)
        w = jax.random.uniform(kw, (fan_in, fan_out), jnp.float32, -bound, bound)
        b = jax.random.uniform(kb, (1, fan_out), jnp.float32, -bound, bound)
        params += [w, b]
    return params, key


# -----------------------------------------------------------------------------
# Pure-JAX reference (spec order: term-by-term power sums, plain division).
# -----------------------------------------------------------------------------
def reference_rational(x, coeffs_flat):
    num = sum(coeffs_flat[i] * x ** (P_COEFF_COUNT - 1 - i)
              for i in range(P_COEFF_COUNT))
    den = sum(coeffs_flat[P_COEFF_COUNT + i] * x ** (Q_COEFF_COUNT - i)
              for i in range(Q_COEFF_COUNT)) + 1.0
    return num / den, den


def check(out, x, coeffs):
    ref_out, ref_den = reference_rational(x, coeffs.reshape(-1))
    assert out.shape == x.shape and out.dtype == jnp.float32
    # The kernel uses Horner evaluation + a refined approx reciprocal
    # (mathematically identical, different f32 rounding order).  Near zeros of
    # the denominator the quotient is ill-conditioned w.r.t. that rounding
    # difference; scale the tolerance by the local condition number.
    cond = (1.0 + jnp.abs(ref_out)) / jnp.maximum(jnp.abs(ref_den), 1e-12)
    tol = 1e-4 + 1e-4 * jnp.abs(ref_out) + 5e-5 * cond
    assert bool(jnp.all(jnp.abs(out - ref_out) <= tol)), \
        "output mismatch vs reference"


if __name__ == "__main__":
    key = jax.random.PRNGKey(0)
    params, key = init_params(key)

    key, k_dummy = jax.random.split(key)
    # TODO(synk): torch.randn(101) is re-sampled every forward(); here the dummy
    # input is a fixed deterministic vector so the run is reproducible.
    dummy = jax.random.normal(k_dummy, (1, HIDDEN_SIZE), jnp.float32)

    test_shapes = [
        (2, 4, 16, 16),   # 4-D input -> flattened/padded to a (16, 128) slab
        (64, 256),        # already lane-dense 2-D, no padding path
        (24, 200),        # ragged last dim -> padded lane-dense slab
    ]
    for shp in test_shapes:
        key, kx = jax.random.split(key)
        x = jax.random.normal(kx, shp, jnp.float32)
        out, coeffs = deep_rational_sr_forward(x, dummy, params)
        out = jax.block_until_ready(out)
        check(out, x, coeffs)

    print("KERNEL_OK")
</pallas_src>

<mosaic_0001>
module attributes {stable_mosaic.version = 11 : i64} {
  func.func @rational_kernel(%arg0: i32, %arg1: i32, %arg2: memref<1x6xf32, #tpu.memory_space<smem>>, %arg3: memref<8x128xf32, #tpu.memory_space<vmem>>, %arg4: memref<8x128xf32, #tpu.memory_space<vmem>>) attributes {dimension_semantics = [#tpu.dimension_semantics<parallel>, #tpu.dimension_semantics<parallel>], iteration_bounds = array<i64: 2, 1>, scalar_prefetch = 0 : i64, scratch_operands = 0 : i64, tpu.core_type = #tpu.core_type<tc>, window_params = [{transform_indices = @transform_0, window_bounds = array<i64: 1, 6>}, {transform_indices = @transform_1, window_bounds = array<i64: 8, 128>}, {transform_indices = @transform_2, window_bounds = array<i64: 8, 128>}]} {
    %c0 = arith.constant 0 : index
    %c0_0 = arith.constant 0 : index
    %0 = vector.load %arg3[%c0, %c0_0] : memref<8x128xf32, #tpu.memory_space<vmem>>, vector<8x128xf32>
    %c0_1 = arith.constant 0 : index
    %c0_2 = arith.constant 0 : index
    %1 = memref.load %arg2[%c0_1, %c0_2] : memref<1x6xf32, #tpu.memory_space<smem>>
    %2 = vector.broadcast %1 : f32 to vector<8x128xf32>
    %3 = arith.mulf %2, %0 : vector<8x128xf32>
    %c0_3 = arith.constant 0 : index
    %c1 = arith.constant 1 : index
    %4 = memref.load %arg2[%c0_3, %c1] : memref<1x6xf32, #tpu.memory_space<smem>>
    %5 = vector.broadcast %4 : f32 to vector<8x128xf32>
    %6 = arith.addf %3, %5 : vector<8x128xf32>
    %7 = arith.mulf %6, %0 : vector<8x128xf32>
    %c0_4 = arith.constant 0 : index
    %c2 = arith.constant 2 : index
    %8 = memref.load %arg2[%c0_4, %c2] : memref<1x6xf32, #tpu.memory_space<smem>>
    %9 = vector.broadcast %8 : f32 to vector<8x128xf32>
    %10 = arith.addf %7, %9 : vector<8x128xf32>
    %11 = arith.mulf %10, %0 : vector<8x128xf32>
    %c0_5 = arith.constant 0 : index
    %c3 = arith.constant 3 : index
    %12 = memref.load %arg2[%c0_5, %c3] : memref<1x6xf32, #tpu.memory_space<smem>>
    %13 = vector.broadcast %12 : f32 to vector<8x128xf32>
    %14 = arith.addf %11, %13 : vector<8x128xf32>
    %c0_6 = arith.constant 0 : index
    %c4 = arith.constant 4 : index
    %15 = memref.load %arg2[%c0_6, %c4] : memref<1x6xf32, #tpu.memory_space<smem>>
    %16 = vector.broadcast %15 : f32 to vector<8x128xf32>
    %17 = arith.mulf %16, %0 : vector<8x128xf32>
    %c0_7 = arith.constant 0 : index
    %c5 = arith.constant 5 : index
    %18 = memref.load %arg2[%c0_7, %c5] : memref<1x6xf32, #tpu.memory_space<smem>>
    %19 = vector.broadcast %18 : f32 to vector<8x128xf32>
    %20 = arith.addf %17, %19 : vector<8x128xf32>
    %21 = arith.mulf %20, %0 : vector<8x128xf32>
    %cst = arith.constant 1.000000e+00 : f32
    %22 = vector.broadcast %cst : f32 to vector<8x128xf32>
    %23 = arith.addf %21, %22 : vector<8x128xf32>
    %24 = tpu.reciprocal %23 {approx = true} : vector<8x128xf32> -> vector<8x128xf32>
    %25 = arith.mulf %23, %24 : vector<8x128xf32>
    %cst_8 = arith.constant 2.000000e+00 : f32
    %26 = vector.broadcast %cst_8 : f32 to vector<8x128xf32>
    %27 = arith.subf %26, %25 : vector<8x128xf32>
    %28 = arith.mulf %24, %27 : vector<8x128xf32>
    %29 = arith.mulf %14, %28 : vector<8x128xf32>
    %c0_9 = arith.constant 0 : index
    %c0_10 = arith.constant 0 : index
    %30 = vector.load %arg4[%c0_9, %c0_10] : memref<8x128xf32, #tpu.memory_space<vmem>>, vector<8x128xf32>
    tpu.vector_store %arg4[%c0_9, %c0_10], %29 {strides = array<i32>} : memref<8x128xf32, #tpu.memory_space<vmem>>, vector<8x128xf32>,
    return
  }
  func.func @transform_0(%arg0: i32, %arg1: i32) -> (i32, i32) {
    %c0_i32 = arith.constant 0 : i32
    %c0_i32_0 = arith.constant 0 : i32
    %c0_i32_1 = arith.constant 0 : i32
    return %c0_i32, %c0_i32_0 : i32, i32
  }
  func.func @transform_1(%arg0: i32, %arg1: i32) -> (i32, i32) {
    %c0_i32 = arith.constant 0 : i32
    return %arg0, %arg1 : i32, i32
  }
  func.func @transform_2(%arg0: i32, %arg1: i32) -> (i32, i32) {
    %c0_i32 = arith.constant 0 : i32
    return %arg0, %arg1 : i32, i32
  }
}

</mosaic_0001>

<llo_original>
// kernel: tpu_custom_call.1
$region0: #{tpu_custom_call.1}
  #allocation0 [shape = 'u32[]', space=smem, size = 0x4, offset = 0x4, fixed_abs, tag = 'smem constant byte address 0x4 - core index']
  #allocation1 [shape = 'u32[72,128]{1,0:T(1,128)}', space=vmem, size = 0x9000, scoped, tag = 'internal scratch']
  %s0 = inlined_call_operand.hbm [shape: f32[1,6], index: 0, kind: input, shape index: {}]
  %s1 = inlined_call_operand.hbm [shape: f32[16,128], index: 1, kind: input, shape index: {}]
  %s2 = inlined_call_operand.hbm [shape: f32[16,128], index: 2, kind: output, shape index: {}]
  %s3 = sld [smem:[#allocation0]]
  $region49: #{tpu_custom_call.1} parent=0
    _
  %s5 = ssub.s32 1, %s3
  %s6 = scalar_select 0, %s5, %s3
  $region1: #{tpu_custom_call.1} parent=0
    #allocation2 [shape = 'u8[512]{0}', space=smem, size = 0x200, scoped, tag = 'input window, operand 0, single buffered']
    #allocation3 [shape = 's32[2]{0}', space=sflag, size = 0x8, scoped, tag = 'scoped memory for tpu_custom_call.1']
    #allocation4 [shape = 's32[2]{0}', space=sflag, size = 0x8, scoped, tag = 'scoped memory for tpu_custom_call.1']
    #allocation5 [shape = 's32[2]{0}', space=sflag, size = 0x8, scoped, tag = 'scoped memory for tpu_custom_call.1']
    #allocation6 [shape = 'u8[8192]{0}', space=vmem, size = 0x2000, scoped, tag = 'input window, operand 1']
    #allocation7 [shape = 'u8[8192]{0}', space=vmem, size = 0x2000, scoped, tag = 'output window, operand 0']
    %7 = vsyncpa [#allocation5], 0
    %8 = vsyncpa [#allocation3], 0
    %s9 = scalar_lea.sflag [#allocation3], 1
    %10 = vsyncpa %s9, 0
    %11 = vsyncpa [#allocation4], 0
    %s12 = scalar_lea.sflag [#allocation4], 1
    %13 = vsyncpa %s12, 0
    loop: start=0, step=1, limit=4
    $region2: #{tpu_custom_call.1} parent=1 // loop_pre_header
      _
    $region3: #{tpu_custom_call.1} parent=1 // loop_header
      %s15 = sphi 0, %s19
      %p16 = scmp.ge.s32.totalorder %s15, 4
      %s22 = sphi 0, %s34
      %s23 = sphi 0, %s30
      %s24 = sphi 0, %s22
      %s25 = sphi 0, %s23
      %s26 = sphi 0, %s24
      %s27 = sphi 0, %s25
      %s35 = sphi 0, %s35
      %s37 = sphi 0, %s35
      %s38 = sphi 0, %s37
      %s52 = sphi 0, %s38
      %s60 = sphi 0, %s62
      %s63 = sphi 0, %s60
      %s64 = sphi 0, %s63
      %s80 = sphi 0, %s64
      %s88 = sphi 0, %s90
      %s91 = sphi 0, %s88
      %s92 = sphi 0, %s91
      %s108 = sphi 0, %s92
    $region4: #{tpu_custom_call.1} parent=1 // loop_header_branch
      %18 = sbr.rel (%p16) target = $region8
    $region5: #{tpu_custom_call.1} parent=1 // loop_body
      %s20 = ssub.s32 %s15, 1
      %s21 = ssub.s32 %s15, 2
      %s28 = sadd.s32 1, %s23
      %p29 = scmp.ge.s32.totalorder %s28, 1
      %s30 = scalar_select %p29, 0, %s28
      %s31 = sadd.s32 1, %s22
      %s32 = scalar_select %p29, %s31, %s22
      %p33 = scmp.ge.s32.totalorder %s32, 2
      %s34 = scalar_select %p33, 0, %s32
      %s36 = sadd.s32 %s35, 1
      %p39 = scmp.eq.s32.totalorder %s15, 1
      %p40 = scmp.ne.s32.totalorder %s35, %s37
      %p41 = scmp.eq.s32.totalorder %s15, 0
      %p42 = por %p40, %p41
      %p43 = scmp.ne.s32.totalorder %s35, %s37
      %p44 = scmp.eq.s32.totalorder %s20, 1
      %p45 = por %p43, %p44
      %p46 = scmp.ne.s32.totalorder %s37, %s38
      %p47 = scmp.eq.s32.totalorder %s20, 0
      %p48 = por %p46, %p47
      %p49 = scmp.ne.s32.totalorder %s37, %s38
      %p50 = scmp.eq.s32.totalorder %s21, 1
      %p51 = por %p49, %p50
      %p53 = scmp.ne.s32.totalorder %s38, %s52
      %p54 = scmp.eq.s32.totalorder %s21, 0
      %p55 = por %p53, %p54
      %s56 = ssub.s32 %s22, %s34
      %s57 = ssub.s32 %s23, %s30
      %s58 = sor.u32 %s56, %s57
      %p59 = scmp.eq.s32.totalorder %s58, 0
      %s61 = sadd.s32 %s60, 1
      %s62 = scalar_select %p59, %s60, %s61
      %p65 = pneg %p59
      %p66 = scmp.eq.s32.totalorder %s15, 1
      %p67 = por %p65, %p66
      %p68 = scmp.ne.s32.totalorder %s60, %s63
      %p69 = scmp.eq.s32.totalorder %s15, 0
      %p70 = por %p68, %p69
      %p71 = scmp.ne.s32.totalorder %s60, %s63
      %p72 = scmp.eq.s32.totalorder %s20, 1
      %p73 = por %p71, %p72
      %p74 = scmp.ne.s32.totalorder %s63, %s64
      %p75 = scmp.eq.s32.totalorder %s20, 0
      %p76 = por %p74, %p75
      %p77 = scmp.ne.s32.totalorder %s63, %s64
      %p78 = scmp.eq.s32.totalorder %s21, 1
      %p79 = por %p77, %p78
      %p81 = scmp.ne.s32.totalorder %s64, %s80
      %p82 = scmp.eq.s32.totalorder %s21, 0
      %p83 = por %p81, %p82
      %s84 = ssub.s32 %s22, %s34
      %s85 = ssub.s32 %s23, %s30
      %s86 = sor.u32 %s84, %s85
      %p87 = scmp.eq.s32.totalorder %s86, 0
      %s89 = sadd.s32 %s88, 1
      %s90 = scalar_select %p87, %s88, %s89
      %p93 = pneg %p87
      %p94 = scmp.eq.s32.totalorder %s15, 1
      %p95 = por %p93, %p94
      %p96 = scmp.ne.s32.totalorder %s88, %s91
      %p97 = scmp.eq.s32.totalorder %s15, 0
      %p98 = por %p96, %p97
      %p99 = scmp.ne.s32.totalorder %s88, %s91
      %p100 = scmp.eq.s32.totalorder %s20, 1
      %p101 = por %p99, %p100
      %p102 = scmp.ne.s32.totalorder %s91, %s92
      %p103 = scmp.eq.s32.totalorder %s20, 0
      %p104 = por %p102, %p103
      %p105 = scmp.ne.s32.totalorder %s91, %s92
      %p106 = scmp.eq.s32.totalorder %s21, 1
      %p107 = por %p105, %p106
      %p109 = scmp.ne.s32.totalorder %s92, %s108
      %p110 = scmp.eq.s32.totalorder %s21, 0
      %p111 = por %p109, %p110
      %p112 = scmp.le.s32.totalorder 1, %s15
      %p113 = scmp.lt.s32.totalorder %s15, 3
      %p114 = pnand %p112, %p113
      %p115 = pneg %p114
      // Predicated region
      $region9: #{tpu_custom_call.1} parent=5 // pred_check
        _
      $region10: #{tpu_custom_call.1} parent=5 // pred_check_branch
        %117 = sbr.rel (%p114) target = $region12
      $region11: #{tpu_custom_call.1} parent=5 // pred_region
        %s118 = ssub.s32 %s15, 1
        // Predicated region
        $region13: #{tpu_custom_call.1} parent=11 // pred_check
          %p119 = pneg %p48
        $region14: #{tpu_custom_call.1} parent=11 // pred_check_branch
          %121 = sbr.rel (%p119) target = $region16
        $region15: #{tpu_custom_call.1} parent=11 // pred_region
          %123 = vsyncadd [#allocation5], 0
          %s125 = sshll.u32 %s0, 4
          %s126 = int_to_ptr.hbm [resolvable:$true] %s125
          %128 = dma.hbm_to_smem %s126, 16, [#allocation2], [#allocation5]
        $region16: #{tpu_custom_call.1} parent=11 // pred_fallthru
          _
      $region12: #{tpu_custom_call.1} parent=5 // pred_fallthru
        _
      %p129 = scmp.lt.s32.totalorder %s15, 2
      // Predicated region
      $region17: #{tpu_custom_call.1} parent=5 // pred_check
        %p130 = pneg %p129
      $region18: #{tpu_custom_call.1} parent=5 // pred_check_branch
        %132 = sbr.rel (%p130) target = $region20
      $region19: #{tpu_custom_call.1} parent=5 // pred_region
        // Predicated region
        $region21: #{tpu_custom_call.1} parent=19 // pred_check
          %p133 = pneg %p70
        $region22: #{tpu_custom_call.1} parent=19 // pred_check_branch
          %135 = sbr.rel (%p133) target = $region24
        $region23: #{tpu_custom_call.1} parent=19 // pred_region
          %s136 = sand.u32 %s60, 1
          %s137 = scalar_lea.sflag [#allocation3], %s136
          %s138 = sand.u32 %s60, 1
          %s139 = smul.addr %s138, 8
          %s140 = scalar_lea.vmem [#allocation6], %s139
          %142 = vsyncadd %s137, 0
          %s143 = sadd.s32 %s23, %s22
          %s144 = smul.addr %s143, 8
          %s145 = scalar_lea.hbm %s1, %s144
          %s147 = sshll.u32 %s145, 4
          %s148 = int_to_ptr.hbm [resolvable:$true] %s147
          %s149 = sshll.u32 %s140, 4
          %s150 = int_to_ptr.vmem [resolvable:$true] %s149
          %152 = dma.hbm_to_vmem [thread:$0]  %s148, 128, %s150, %s137
        $region24: #{tpu_custom_call.1} parent=19 // pred_fallthru
          _
      $region20: #{tpu_custom_call.1} parent=5 // pred_fallthru
        _
      %p153 = scmp.le.s32.totalorder 1, %s15
      %p154 = scmp.lt.s32.totalorder %s15, 3
      %p155 = pnand %p153, %p154
      %p156 = pneg %p155
      // Predicated region
      $region25: #{tpu_custom_call.1} parent=5 // pred_check
        _
      $region26: #{tpu_custom_call.1} parent=5 // pred_check_branch
        %158 = sbr.rel (%p155) target = $region28
      $region27: #{tpu_custom_call.1} parent=5 // pred_region
        %s159 = ssub.s32 %s15, 1
        // Predicated region
        $region29: #{tpu_custom_call.1} parent=27 // pred_check
          %p160 = pneg %p48
        $region30: #{tpu_custom_call.1} parent=27 // pred_check_branch
          %162 = sbr.rel (%p160) target = $region32
        $region31: #{tpu_custom_call.1} parent=27 // pred_region
          %164 = dma.done [#allocation5], 16
        $region32: #{tpu_custom_call.1} parent=27 // pred_fallthru
          _
        %s165 = sand.u32 %s63, 1
        %s166 = scalar_lea.sflag [#allocation3], %s165
        %s167 = sand.u32 %s63, 1
        %s168 = smul.addr %s167, 8
        %s169 = scalar_lea.vmem [#allocation6], %s168
        // Predicated region
        $region33: #{tpu_custom_call.1} parent=27 // pred_check
          %p170 = pneg %p76
        $region34: #{tpu_custom_call.1} parent=27 // pred_check_branch
          %172 = sbr.rel (%p170) target = $region36
        $region35: #{tpu_custom_call.1} parent=27 // pred_region
          %174 = dma.done %s166, 128
        $region36: #{tpu_custom_call.1} parent=27 // pred_fallthru
          _
        %175 = sfence
        %p176 = pneg %p48
        %p177 = pneg %p45
        %s178 = sand.u32 %s63, 1
        %s179 = scalar_lea.sflag [#allocation3], %s178
        %s180 = sand.u32 %s63, 1
        %s181 = smul.addr %s180, 8
        %s182 = scalar_lea.vmem [#allocation6], %s181
        %p183 = pneg %p76
        %p184 = pneg %p73
        %p185 = pneg %p104
        %p186 = pneg %p101
        %s187 = sand.u32 %s91, 1
        %s188 = scalar_lea.sflag [#allocation4], %s187
        %s189 = sand.u32 %s91, 1
        %s190 = smul.addr %s189, 8
        %s191 = scalar_lea.vmem [#allocation7], %s190
        %v192 = vld [vmem:[%s169] sm:$0xff]
        %s193 = sld [smem:[#allocation2]]
        %v194 = vstv %s193
        %v195 = vmul.f32 %v194, %v192
        %s196 = sld [smem:[#allocation2 + $0x1]]
        %v197 = vstv %s196
        %v198 = vadd.f32 %v195, %v197
        %v199 = vmul.f32 %v198, %v192
        %s200 = sld [smem:[#allocation2 + $0x2]]
        %v201 = vstv %s200
        %v202 = vadd.f32 %v199, %v201
        %v203 = vmul.f32 %v202, %v192
        %s204 = sld [smem:[#allocation2 + $0x3]]
        %v205 = vstv %s204
        %v206 = vadd.f32 %v203, %v205
        %s207 = sld [smem:[#allocation2 + $0x4]]
        %v208 = vstv %s207
        %v209 = vmul.f32 %v208, %v192
        %s210 = sld [smem:[#allocation2 + $0x5]]
        %v211 = vstv %s210
        %v212 = vadd.f32 %v209, %v211
        %v213 = vmul.f32 %v212, %v192
        %v214 = vadd.f32 %v213, 1.0
        %v215 = vrcp.pop %v214
        %v216 = vmul.f32 %v214, %v215
        %v217 = vsub.f32 2.0, %v216
        %v218 = vmul.f32 %v215, %v217
        %v219 = vmul.f32 %v206, %v218
        %220 = vst [vmem:[%s191] sm:$0xff] %v219
        %s221 = sand.u32 %s91, 1
        %s222 = scalar_lea.sflag [#allocation4], %s221
        %s223 = sand.u32 %s91, 1
        %s224 = smul.addr %s223, 8
        %s225 = scalar_lea.vmem [#allocation7], %s224
        // Predicated region
        $region37: #{tpu_custom_call.1} parent=27 // pred_check
          %p226 = pneg %p101
        $region38: #{tpu_custom_call.1} parent=27 // pred_check_branch
          %228 = sbr.rel (%p226) target = $region40
        $region39: #{tpu_custom_call.1} parent=27 // pred_region
          %230 = vsyncadd %s222, 0
          %s231 = sadd.s32 %s25, %s24
          %s232 = smul.addr %s231, 8
          %s233 = scalar_lea.hbm %s2, %s232
          %s235 = sshll.u32 %s225, 4
          %s236 = int_to_ptr.vmem [resolvable:$true] %s235
          %s237 = sshll.u32 %s233, 4
          %s238 = int_to_ptr.hbm [resolvable:$true] %s237
          %240 = dma.vmem_to_hbm [thread:$0]  %s236, 128, %s238, %s222
        $region40: #{tpu_custom_call.1} parent=27 // pred_fallthru
          _
      $region28: #{tpu_custom_call.1} parent=5 // pred_fallthru
        _
      %p241 = scmp.le.s32.totalorder 2, %s15
      // Predicated region
      $region41: #{tpu_custom_call.1} parent=5 // pred_check
        %p242 = pneg %p241
      $region42: #{tpu_custom_call.1} parent=5 // pred_check_branch
        %244 = sbr.rel (%p242) target = $region44
      $region43: #{tpu_custom_call.1} parent=5 // pred_region
        %s245 = ssub.s32 %s15, 2
        // Predicated region
        $region45: #{tpu_custom_call.1} parent=43 // pred_check
          %p246 = pneg %p107
        $region46: #{tpu_custom_call.1} parent=43 // pred_check_branch
          %248 = sbr.rel (%p246) target = $region48
        $region47: #{tpu_custom_call.1} parent=43 // pred_region
          %s249 = sand.u32 %s92, 1
          %s250 = scalar_lea.sflag [#allocation4], %s249
          %s251 = sand.u32 %s92, 1
          %s252 = smul.addr %s251, 8
          %s253 = scalar_lea.vmem [#allocation7], %s252
          %255 = dma.done %s250, 128
        $region48: #{tpu_custom_call.1} parent=43 // pred_fallthru
          _
      $region44: #{tpu_custom_call.1} parent=5 // pred_fallthru
        _
    $region6: #{tpu_custom_call.1} parent=1 // loop_footer
      %s19 = sadd.s32 1, %s15
    $region7: #{tpu_custom_call.1} parent=1 // loop_footer_branch
      %14 = sbr.rel target = $region3
    $region8: #{tpu_custom_call.1} parent=1 // loop_exit
      _
    %256 = vsyncpa [#allocation3], 1
    %s257 = scalar_lea.sflag [#allocation3], 1
    %258 = vsyncpa %s257, 1
    %259 = vsyncpa [#allocation4], 1
    %s260 = scalar_lea.sflag [#allocation4], 1
    %261 = vsyncpa %s260, 1
    %262 = vsyncpa [#allocation5], 1
    %s263 = scalar_lea.sflag [#allocation5], 1
    %264 = vsyncpa %s263, 1

</llo_original>
